<compile_context>
chip_gen: v7x
topology: tpu7x:2x2x1
jax: 0.10.0
libtpu: 0.0.40
codegen_flags: <defaults>
</compile_context>

<pallas_src>
import functools

import jax
import jax.numpy as jnp
from jax import lax
from jax.experimental import pallas as pl
from jax.experimental.pallas import tpu as pltpu

_LANES = 128
_SUBLANES = 8
# Cap sublane-rows per grid step: 1024 rows -> 3*1024*128*4 B = 1.5 MiB per
# pose input block (x2 inputs x2 pipeline buffers = 6 MiB), fine on all chips.
_MAX_ROWS_PER_STEP = 1024


def _quat_products(x, y, z):
    """Axis-angle components [8, 128] -> 10 normalized-quaternion pairwise products.

    Matches SPIN/VIBE batch_rodrigues: angle = ||theta + 1e-8||, quaternion
    (cos(a/2), sin(a/2)*theta/angle), renormalized; the renormalization is
    folded in as products / |q|^2, with 1/|q|^2 computed via approximate EUP
    reciprocal plus one Newton refinement (f32-exact to a few ulp).
    """
    xs = x + 1e-8
    ys = y + 1e-8
    zs = z + 1e-8
    s = xs * xs + ys * ys + zs * zs          # ||theta + 1e-8||^2
    inv_angle = lax.rsqrt(s)                 # EUP rsqrt (replaces sqrt + div)
    angle = s * inv_angle
    half = angle * 0.5
    w = jnp.cos(half)
    k = jnp.sin(half) * inv_angle            # sin(half) / angle
    qx = x * k
    qy = y * k
    qz = z * k
    ww, xx, yy, zz = w * w, qx * qx, qy * qy, qz * qz
    n2 = ww + xx + yy + zz                   # |q|^2 (very close to 1)
    r = pl.reciprocal(n2, approx=True)       # EUP approximate reciprocal
    inv_n2 = r * (2.0 - n2 * r)              # one Newton step -> ~f32 exact
    return (ww * inv_n2, xx * inv_n2, yy * inv_n2, zz * inv_n2,
            w * qx * inv_n2, w * qy * inv_n2, w * qz * inv_n2,
            qx * qy * inv_n2, qx * qz * inv_n2, qy * qz * inv_n2)


def _channel_sq_diffs(p, g):
    """Squared rotation-matrix entry diffs, split into (diagonal, off/2) sums.

    The 6 off-diagonal entries are 2*(...); the factor is dropped here and the
    off-diagonal accumulator is weighted by 4.0 by the caller.
    """
    pww, pxx, pyy, pzz, pwx, pwy, pwz, pxy, pxz, pyz = p
    gww, gxx, gyy, gzz, gwx, gwy, gwz, gxy, gxz, gyz = g

    # Diagonal channels, factored: R00 = t0 - t1, R11 = t2 + t3, R22 = t2 - t3.
    pt0, pt1, pt2, pt3 = pww + pxx, pyy + pzz, pww - pxx, pyy - pzz
    gt0, gt1, gt2, gt3 = gww + gxx, gyy + gzz, gww - gxx, gyy - gzz
    d0 = (pt0 - pt1) - (gt0 - gt1)
    d1 = (pt2 + pt3) - (gt2 + gt3)
    d2 = (pt2 - pt3) - (gt2 - gt3)
    diag = d0 * d0 + d1 * d1 + d2 * d2

    # Off-diagonal channels (without the 2x factor).
    o01 = (pxy - pwz) - (gxy - gwz)
    o02 = (pwy + pxz) - (gwy + gxz)
    o10 = (pwz + pxy) - (gwz + gxy)
    o12 = (pyz - pwx) - (gyz - gwx)
    o20 = (pxz - pwy) - (gxz - gwy)
    o21 = (pwx + pyz) - (gwx + gyz)
    off = (o01 * o01 + o02 * o02 + o10 * o10
           + o12 * o12 + o20 * o20 + o21 * o21)
    return diag, off


def _vibe_loss_kernel(pred_aa_ref, gt_aa_ref, pred_b_ref, gt_b_ref,
                      out_ref, acc_ref, *,
                      pose_w, shape_w, n_joints, n_betas, sub_tiles):
    step = pl.program_id(0)

    @pl.when(step == 0)
    def _():
        acc_ref[...] = jnp.zeros_like(acc_ref)

    # Static ref-views per axis-angle component (no load, zero runtime cost).
    px_ref, py_ref, pz_ref = pred_aa_ref.at[0], pred_aa_ref.at[1], pred_aa_ref.at[2]
    gx_ref, gy_ref, gz_ref = gt_aa_ref.at[0], gt_aa_ref.at[1], gt_aa_ref.at[2]

    def body(t, carry):
        diag_acc, off_acc = carry
        r = pl.multiple_of(t * _SUBLANES, _SUBLANES)
        sl = pl.ds(r, _SUBLANES)
        p_prods = _quat_products(px_ref[sl, :], py_ref[sl, :], pz_ref[sl, :])
        g_prods = _quat_products(gx_ref[sl, :], gy_ref[sl, :], gz_ref[sl, :])
        d_sq, o_sq = _channel_sq_diffs(p_prods, g_prods)
        return diag_acc + d_sq, off_acc + o_sq

    zero = jnp.zeros((_SUBLANES, _LANES), jnp.float32)
    unroll = 2 if sub_tiles >= 2 else 1
    diag_acc, off_acc = lax.fori_loop(0, sub_tiles, body, (zero, zero),
                                      unroll=unroll)
    acc_ref[...] += diag_acc + 4.0 * off_acc

    @pl.when(step == pl.num_programs(0) - 1)
    def _():
        db = pred_b_ref[...] - gt_b_ref[...]      # lane-dense, pads cancel
        shape_sse = jnp.sum(db * db)              # tiny cross-lane reduce
        pose_sse = jnp.sum(acc_ref[...])          # the one big cross-lane reduce
        total = ((pose_w / (9.0 * n_joints)) * pose_sse
                 + (shape_w / float(n_betas)) * shape_sse)
        out_ref[...] = jnp.reshape(total, (1, 1)).astype(jnp.float32)


def _pack_pose(pose_flat, n_joints, rows_pad):
    # [B, 72] -> component-major [3, n_joints], zero-pad (identically for pred
    # and gt => padded joints are identity rotations on both sides and
    # contribute exactly 0), reshape to dense (8,128) tiles [3, rows_pad, 128].
    aa = jnp.transpose(pose_flat.reshape(n_joints, 3)).astype(jnp.float32)
    aa = jnp.pad(aa, ((0, 0), (0, rows_pad * _LANES - n_joints)))
    return aa.reshape(3, rows_pad, _LANES)


def _pack_flat(x, rows):
    # Flatten + zero-pad lane-dense to [rows, 128].
    flat = x.reshape(-1).astype(jnp.float32)
    flat = jnp.pad(flat, (0, rows * _LANES - flat.shape[0]))
    return flat.reshape(rows, _LANES)


@functools.partial(jax.jit,
                   static_argnames=("e_pose_loss_weight", "e_shape_loss_weight"))
def vibe_loss(theta, gt_pose, gt_shape, *,
              e_pose_loss_weight=1.0, e_shape_loss_weight=0.001):
    """theta: [B, 85], gt_pose: [B, 72], gt_shape: [B, 10] -> scalar loss."""
    B = theta.shape[0]
    n_joints = B * 24
    pred_pose = theta[:, 3:75]                 # [B, 72]
    pred_betas = theta[:, 75:85]               # [B, 10]

    # Adaptive tiling: pad joints only to a multiple of 8 sublanes of 128 lanes;
    # typical batches run as a single grid step.
    rows_min = pl.cdiv(n_joints, _LANES)
    rows_min8 = pl.cdiv(rows_min, _SUBLANES) * _SUBLANES
    rows_per_step = min(rows_min8, _MAX_ROWS_PER_STEP)
    num_steps = pl.cdiv(rows_min8, rows_per_step)
    rows_pad = num_steps * rows_per_step
    sub_tiles = rows_per_step // _SUBLANES

    pred_aa = _pack_pose(pred_pose, n_joints, rows_pad)
    gt_aa = _pack_pose(gt_pose, n_joints, rows_pad)

    n_betas = int(gt_shape.shape[0]) * int(gt_shape.shape[1])
    rows_b = pl.cdiv(max(n_betas, 1), _LANES)
    rows_b = pl.cdiv(rows_b, _SUBLANES) * _SUBLANES
    pred_b = _pack_flat(pred_betas, rows_b)
    gt_b = _pack_flat(gt_shape, rows_b)

    kernel = functools.partial(
        _vibe_loss_kernel,
        pose_w=float(e_pose_loss_weight),
        shape_w=float(e_shape_loss_weight),
        n_joints=n_joints,
        n_betas=n_betas,
        sub_tiles=sub_tiles,
    )

    out = pl.pallas_call(
        kernel,
        out_shape=jax.ShapeDtypeStruct((1, 1), jnp.float32),
        grid_spec=pltpu.PrefetchScalarGridSpec(
            num_scalar_prefetch=0,
            grid=(num_steps,),
            in_specs=[
                pl.BlockSpec((3, rows_per_step, _LANES), lambda i: (0, i, 0)),
                pl.BlockSpec((3, rows_per_step, _LANES), lambda i: (0, i, 0)),
                pl.BlockSpec((rows_b, _LANES), lambda i: (0, 0)),
                pl.BlockSpec((rows_b, _LANES), lambda i: (0, 0)),
            ],
            out_specs=pl.BlockSpec((1, 1), lambda i: (0, 0)),
            scratch_shapes=[pltpu.VMEM((_SUBLANES, _LANES), jnp.float32)],
        ),
        compiler_params=pltpu.CompilerParams(
            dimension_semantics=("arbitrary",)),
    )(pred_aa, gt_aa, pred_b, gt_b)
    return out[0, 0]


def _reference_vibe_loss(theta, gt_pose, gt_shape,
                         e_pose_loss_weight=1.0, e_shape_loss_weight=0.001):
    """Pure-JAX reference of the PyTorch forward (for a correctness check)."""
    def batch_rodrigues(aa):                           # [N, 3] -> [N, 3, 3]
        angle = jnp.linalg.norm(aa + 1e-8, axis=1, keepdims=True)
        normalized = aa / angle
        half = angle * 0.5
        quat = jnp.concatenate([jnp.cos(half), jnp.sin(half) * normalized], axis=1)
        quat = quat / jnp.linalg.norm(quat, axis=1, keepdims=True)
        w, x, y, z = quat[:, 0], quat[:, 1], quat[:, 2], quat[:, 3]
        w2, x2, y2, z2 = w * w, x * x, y * y, z * z
        wx, wy, wz = w * x, w * y, w * z
        xy, xz, yz = x * y, x * z, y * z
        R = jnp.stack([w2 + x2 - y2 - z2, 2 * xy - 2 * wz, 2 * wy + 2 * xz,
                       2 * wz + 2 * xy, w2 - x2 + y2 - z2, 2 * yz - 2 * wx,
                       2 * xz - 2 * wy, 2 * wx + 2 * yz, w2 - x2 - y2 + z2], axis=1)
        return R.reshape(-1, 3, 3)

    pred_pose = theta[:, 3:75]
    pred_betas = theta[:, 75:85]
    pred_R = batch_rodrigues(pred_pose.reshape(-1, 3))
    gt_R = batch_rodrigues(gt_pose.reshape(-1, 3))
    loss_pose = jnp.mean((pred_R - gt_R) ** 2)
    loss_shape = jnp.mean((pred_betas - gt_shape) ** 2)
    return e_pose_loss_weight * loss_pose + e_shape_loss_weight * loss_shape


if __name__ == "__main__":
    B = 2
    key = jax.random.PRNGKey(0)
    k1, k2, k3 = jax.random.split(key, 3)
    # generator_outputs['theta']: [B, 85] = 3 cam + 72 axis-angle pose + 10 betas
    theta = jax.random.normal(k1, (B, 85), dtype=jnp.float32) * 0.5
    # real_input['pose']: [B, 72], real_input['shape']: [B, 10]
    gt_pose = jax.random.normal(k2, (B, 72), dtype=jnp.float32) * 0.5
    gt_shape = jax.random.normal(k3, (B, 10), dtype=jnp.float32)

    loss = vibe_loss(theta, gt_pose, gt_shape)
    jax.block_until_ready(loss)

    ref = _reference_vibe_loss(theta, gt_pose, gt_shape)
    assert jnp.allclose(loss, ref, rtol=1e-4, atol=1e-6), (loss, ref)

    print("KERNEL_OK")
</pallas_src>

<mosaic_0001>
module attributes {stable_mosaic.version = 11 : i64} {
  func.func @_vibe_loss_kernel(%arg0: i32, %arg1: memref<3x8x128xf32, #tpu.memory_space<vmem>>, %arg2: memref<3x8x128xf32, #tpu.memory_space<vmem>>, %arg3: memref<8x128xf32, #tpu.memory_space<vmem>>, %arg4: memref<8x128xf32, #tpu.memory_space<vmem>>, %arg5: memref<1x1xf32, #tpu.memory_space<vmem>>, %arg6: memref<8x128xf32, #tpu.memory_space<vmem>>) attributes {dimension_semantics = [#tpu.dimension_semantics<arbitrary>], iteration_bounds = array<i64: 1>, scalar_prefetch = 0 : i64, scratch_operands = 1 : i64, tpu.core_type = #tpu.core_type<tc>, window_params = [{transform_indices = @transform_0, window_bounds = array<i64: 3, 8, 128>}, {transform_indices = @transform_1, window_bounds = array<i64: 3, 8, 128>}, {pipeline_mode = #tpu.pipeline_mode<synchronous>, transform_indices = @transform_2, window_bounds = array<i64: 8, 128>}, {pipeline_mode = #tpu.pipeline_mode<synchronous>, transform_indices = @transform_3, window_bounds = array<i64: 8, 128>}, {pipeline_mode = #tpu.pipeline_mode<synchronous>, transform_indices = @transform_4, window_bounds = array<i64: 1, 1>}]} {
    %c0_i32 = arith.constant 0 : i32
    %0 = arith.cmpi eq, %arg0, %c0_i32 : i32
    %1 = arith.extui %0 : i1 to i32
    %c0_i32_0 = arith.constant 0 : i32
    %2 = arith.cmpi ne, %1, %c0_i32_0 : i32
    scf.if %2 {
      %cst_41 = arith.constant 0.000000e+00 : f32
      %190 = vector.broadcast %cst_41 : f32 to vector<8x128xf32>
      %c0_42 = arith.constant 0 : index
      %c0_43 = arith.constant 0 : index
      %191 = vector.load %arg6[%c0_42, %c0_43] : memref<8x128xf32, #tpu.memory_space<vmem>>, vector<8x128xf32>
      tpu.vector_store %arg6[%c0_42, %c0_43], %190 {strides = array<i32>} : memref<8x128xf32, #tpu.memory_space<vmem>>, vector<8x128xf32>,
    } else {
    }
    %cst = arith.constant 0.000000e+00 : f32
    %3 = vector.broadcast %cst : f32 to vector<8x128xf32>
    %c0_i32_1 = arith.constant 0 : i32
    %c1_i32 = arith.constant 1 : i32
    %c2_i32 = arith.constant 2 : i32
    %c0_i32_2 = arith.constant 0 : i32
    %c1_i32_3 = arith.constant 1 : i32
    %c2_i32_4 = arith.constant 2 : i32
    %c0_i32_5 = arith.constant 0 : i32
    %c8_i32 = arith.constant 8 : i32
    %4 = arith.muli %c0_i32_5, %c8_i32 : i32
    %5 = tpu.assume_multiple %4, 8 : i32
    %c0_i32_6 = arith.constant 0 : i32
    %c0_i32_7 = arith.constant 0 : i32
    %6 = tpu.memref_slice %arg1[%c0_i32_1, %c0_i32_6, %c0_i32_7] : memref<3x8x128xf32, #tpu.memory_space<vmem>> -> memref<1x8x128xf32, #tpu.memory_space<vmem>>
    %7 = tpu.memref_squeeze %6 : memref<1x8x128xf32, #tpu.memory_space<vmem>> -> memref<8x128xf32, #tpu.memory_space<vmem>>
    %8 = arith.index_cast %5 : i32 to index
    %c0 = arith.constant 0 : index
    %9 = vector.load %7[%8, %c0] : memref<8x128xf32, #tpu.memory_space<vmem>>, vector<8x128xf32>
    %c0_i32_8 = arith.constant 0 : i32
    %c0_i32_9 = arith.constant 0 : i32
    %10 = tpu.memref_slice %arg1[%c1_i32, %c0_i32_8, %c0_i32_9] : memref<3x8x128xf32, #tpu.memory_space<vmem>> -> memref<1x8x128xf32, #tpu.memory_space<vmem>>
    %11 = tpu.memref_squeeze %10 : memref<1x8x128xf32, #tpu.memory_space<vmem>> -> memref<8x128xf32, #tpu.memory_space<vmem>>
    %12 = arith.index_cast %5 : i32 to index
    %c0_10 = arith.constant 0 : index
    %13 = vector.load %11[%12, %c0_10] : memref<8x128xf32, #tpu.memory_space<vmem>>, vector<8x128xf32>
    %c0_i32_11 = arith.constant 0 : i32
    %c0_i32_12 = arith.constant 0 : i32
    %14 = tpu.memref_slice %arg1[%c2_i32, %c0_i32_11, %c0_i32_12] : memref<3x8x128xf32, #tpu.memory_space<vmem>> -> memref<1x8x128xf32, #tpu.memory_space<vmem>>
    %15 = tpu.memref_squeeze %14 : memref<1x8x128xf32, #tpu.memory_space<vmem>> -> memref<8x128xf32, #tpu.memory_space<vmem>>
    %16 = arith.index_cast %5 : i32 to index
    %c0_13 = arith.constant 0 : index
    %17 = vector.load %15[%16, %c0_13] : memref<8x128xf32, #tpu.memory_space<vmem>>, vector<8x128xf32>
    %cst_14 = arith.constant 9.99999993E-9 : f32
    %18 = vector.broadcast %cst_14 : f32 to vector<8x128xf32>
    %19 = arith.addf %9, %18 : vector<8x128xf32>
    %cst_15 = arith.constant 9.99999993E-9 : f32
    %20 = vector.broadcast %cst_15 : f32 to vector<8x128xf32>
    %21 = arith.addf %13, %20 : vector<8x128xf32>
    %cst_16 = arith.constant 9.99999993E-9 : f32
    %22 = vector.broadcast %cst_16 : f32 to vector<8x128xf32>
    %23 = arith.addf %17, %22 : vector<8x128xf32>
    %24 = arith.mulf %19, %19 : vector<8x128xf32>
    %25 = arith.mulf %21, %21 : vector<8x128xf32>
    %26 = arith.addf %24, %25 : vector<8x128xf32>
    %27 = arith.mulf %23, %23 : vector<8x128xf32>
    %28 = arith.addf %26, %27 : vector<8x128xf32>
    %29 = math.rsqrt %28 : vector<8x128xf32>
    %30 = arith.mulf %28, %29 : vector<8x128xf32>
    %cst_17 = arith.constant 5.000000e-01 : f32
    %31 = vector.broadcast %cst_17 : f32 to vector<8x128xf32>
    %32 = arith.mulf %30, %31 : vector<8x128xf32>
    %33 = math.cos %32 : vector<8x128xf32>
    %34 = math.sin %32 : vector<8x128xf32>
    %35 = arith.mulf %34, %29 : vector<8x128xf32>
    %36 = arith.mulf %9, %35 : vector<8x128xf32>
    %37 = arith.mulf %13, %35 : vector<8x128xf32>
    %38 = arith.mulf %17, %35 : vector<8x128xf32>
    %39 = arith.mulf %33, %33 : vector<8x128xf32>
    %40 = arith.mulf %36, %36 : vector<8x128xf32>
    %41 = arith.mulf %37, %37 : vector<8x128xf32>
    %42 = arith.mulf %38, %38 : vector<8x128xf32>
    %43 = arith.addf %39, %40 : vector<8x128xf32>
    %44 = arith.addf %43, %41 : vector<8x128xf32>
    %45 = arith.addf %44, %42 : vector<8x128xf32>
    %46 = tpu.reciprocal %45 {approx = true} : vector<8x128xf32> -> vector<8x128xf32>
    %47 = arith.mulf %45, %46 : vector<8x128xf32>
    %cst_18 = arith.constant 2.000000e+00 : f32
    %48 = vector.broadcast %cst_18 : f32 to vector<8x128xf32>
    %49 = arith.subf %48, %47 : vector<8x128xf32>
    %50 = arith.mulf %46, %49 : vector<8x128xf32>
    %51 = arith.mulf %39, %50 : vector<8x128xf32>
    %52 = arith.mulf %40, %50 : vector<8x128xf32>
    %53 = arith.mulf %41, %50 : vector<8x128xf32>
    %54 = arith.mulf %42, %50 : vector<8x128xf32>
    %55 = arith.mulf %33, %36 : vector<8x128xf32>
    %56 = arith.mulf %55, %50 : vector<8x128xf32>
    %57 = arith.mulf %33, %37 : vector<8x128xf32>
    %58 = arith.mulf %57, %50 : vector<8x128xf32>
    %59 = arith.mulf %33, %38 : vector<8x128xf32>
    %60 = arith.mulf %59, %50 : vector<8x128xf32>
    %61 = arith.mulf %36, %37 : vector<8x128xf32>
    %62 = arith.mulf %61, %50 : vector<8x128xf32>
    %63 = arith.mulf %36, %38 : vector<8x128xf32>
    %64 = arith.mulf %63, %50 : vector<8x128xf32>
    %65 = arith.mulf %37, %38 : vector<8x128xf32>
    %66 = arith.mulf %65, %50 : vector<8x128xf32>
    %c0_i32_19 = arith.constant 0 : i32
    %c0_i32_20 = arith.constant 0 : i32
    %67 = tpu.memref_slice %arg2[%c0_i32_2, %c0_i32_19, %c0_i32_20] : memref<3x8x128xf32, #tpu.memory_space<vmem>> -> memref<1x8x128xf32, #tpu.memory_space<vmem>>
    %68 = tpu.memref_squeeze %67 : memref<1x8x128xf32, #tpu.memory_space<vmem>> -> memref<8x128xf32, #tpu.memory_space<vmem>>
    %69 = arith.index_cast %5 : i32 to index
    %c0_21 = arith.constant 0 : index
    %70 = vector.load %68[%69, %c0_21] : memref<8x128xf32, #tpu.memory_space<vmem>>, vector<8x128xf32>
    %c0_i32_22 = arith.constant 0 : i32
    %c0_i32_23 = arith.constant 0 : i32
    %71 = tpu.memref_slice %arg2[%c1_i32_3, %c0_i32_22, %c0_i32_23] : memref<3x8x128xf32, #tpu.memory_space<vmem>> -> memref<1x8x128xf32, #tpu.memory_space<vmem>>
    %72 = tpu.memref_squeeze %71 : memref<1x8x128xf32, #tpu.memory_space<vmem>> -> memref<8x128xf32, #tpu.memory_space<vmem>>
    %73 = arith.index_cast %5 : i32 to index
    %c0_24 = arith.constant 0 : index
    %74 = vector.load %72[%73, %c0_24] : memref<8x128xf32, #tpu.memory_space<vmem>>, vector<8x128xf32>
    %c0_i32_25 = arith.constant 0 : i32
    %c0_i32_26 = arith.constant 0 : i32
    %75 = tpu.memref_slice %arg2[%c2_i32_4, %c0_i32_25, %c0_i32_26] : memref<3x8x128xf32, #tpu.memory_space<vmem>> -> memref<1x8x128xf32, #tpu.memory_space<vmem>>
    %76 = tpu.memref_squeeze %75 : memref<1x8x128xf32, #tpu.memory_space<vmem>> -> memref<8x128xf32, #tpu.memory_space<vmem>>
    %77 = arith.index_cast %5 : i32 to index
    %c0_27 = arith.constant 0 : index
    %78 = vector.load %76[%77, %c0_27] : memref<8x128xf32, #tpu.memory_space<vmem>>, vector<8x128xf32>
    %cst_28 = arith.constant 9.99999993E-9 : f32
    %79 = vector.broadcast %cst_28 : f32 to vector<8x128xf32>
    %80 = arith.addf %70, %79 : vector<8x128xf32>
    %cst_29 = arith.constant 9.99999993E-9 : f32
    %81 = vector.broadcast %cst_29 : f32 to vector<8x128xf32>
    %82 = arith.addf %74, %81 : vector<8x128xf32>
    %cst_30 = arith.constant 9.99999993E-9 : f32
    %83 = vector.broadcast %cst_30 : f32 to vector<8x128xf32>
    %84 = arith.addf %78, %83 : vector<8x128xf32>
    %85 = arith.mulf %80, %80 : vector<8x128xf32>
    %86 = arith.mulf %82, %82 : vector<8x128xf32>
    %87 = arith.addf %85, %86 : vector<8x128xf32>
    %88 = arith.mulf %84, %84 : vector<8x128xf32>
    %89 = arith.addf %87, %88 : vector<8x128xf32>
    %90 = math.rsqrt %89 : vector<8x128xf32>
    %91 = arith.mulf %89, %90 : vector<8x128xf32>
    %cst_31 = arith.constant 5.000000e-01 : f32
    %92 = vector.broadcast %cst_31 : f32 to vector<8x128xf32>
    %93 = arith.mulf %91, %92 : vector<8x128xf32>
    %94 = math.cos %93 : vector<8x128xf32>
    %95 = math.sin %93 : vector<8x128xf32>
    %96 = arith.mulf %95, %90 : vector<8x128xf32>
    %97 = arith.mulf %70, %96 : vector<8x128xf32>
    %98 = arith.mulf %74, %96 : vector<8x128xf32>
    %99 = arith.mulf %78, %96 : vector<8x128xf32>
    %100 = arith.mulf %94, %94 : vector<8x128xf32>
    %101 = arith.mulf %97, %97 : vector<8x128xf32>
    %102 = arith.mulf %98, %98 : vector<8x128xf32>
    %103 = arith.mulf %99, %99 : vector<8x128xf32>
    %104 = arith.addf %100, %101 : vector<8x128xf32>
    %105 = arith.addf %104, %102 : vector<8x128xf32>
    %106 = arith.addf %105, %103 : vector<8x128xf32>
    %107 = tpu.reciprocal %106 {approx = true} : vector<8x128xf32> -> vector<8x128xf32>
    %108 = arith.mulf %106, %107 : vector<8x128xf32>
    %cst_32 = arith.constant 2.000000e+00 : f32
    %109 = vector.broadcast %cst_32 : f32 to vector<8x128xf32>
    %110 = arith.subf %109, %108 : vector<8x128xf32>
    %111 = arith.mulf %107, %110 : vector<8x128xf32>
    %112 = arith.mulf %100, %111 : vector<8x128xf32>
    %113 = arith.mulf %101, %111 : vector<8x128xf32>
    %114 = arith.mulf %102, %111 : vector<8x128xf32>
    %115 = arith.mulf %103, %111 : vector<8x128xf32>
    %116 = arith.mulf %94, %97 : vector<8x128xf32>
    %117 = arith.mulf %116, %111 : vector<8x128xf32>
    %118 = arith.mulf %94, %98 : vector<8x128xf32>
    %119 = arith.mulf %118, %111 : vector<8x128xf32>
    %120 = arith.mulf %94, %99 : vector<8x128xf32>
    %121 = arith.mulf %120, %111 : vector<8x128xf32>
    %122 = arith.mulf %97, %98 : vector<8x128xf32>
    %123 = arith.mulf %122, %111 : vector<8x128xf32>
    %124 = arith.mulf %97, %99 : vector<8x128xf32>
    %125 = arith.mulf %124, %111 : vector<8x128xf32>
    %126 = arith.mulf %98, %99 : vector<8x128xf32>
    %127 = arith.mulf %126, %111 : vector<8x128xf32>
    %128 = arith.addf %51, %52 : vector<8x128xf32>
    %129 = arith.addf %53, %54 : vector<8x128xf32>
    %130 = arith.subf %51, %52 : vector<8x128xf32>
    %131 = arith.subf %53, %54 : vector<8x128xf32>
    %132 = arith.addf %112, %113 : vector<8x128xf32>
    %133 = arith.addf %114, %115 : vector<8x128xf32>
    %134 = arith.subf %112, %113 : vector<8x128xf32>
    %135 = arith.subf %114, %115 : vector<8x128xf32>
    %136 = arith.subf %128, %129 : vector<8x128xf32>
    %137 = arith.subf %132, %133 : vector<8x128xf32>
    %138 = arith.subf %136, %137 : vector<8x128xf32>
    %139 = arith.addf %130, %131 : vector<8x128xf32>
    %140 = arith.addf %134, %135 : vector<8x128xf32>
    %141 = arith.subf %139, %140 : vector<8x128xf32>
    %142 = arith.subf %130, %131 : vector<8x128xf32>
    %143 = arith.subf %134, %135 : vector<8x128xf32>
    %144 = arith.subf %142, %143 : vector<8x128xf32>
    %145 = arith.mulf %138, %138 : vector<8x128xf32>
    %146 = arith.mulf %141, %141 : vector<8x128xf32>
    %147 = arith.addf %145, %146 : vector<8x128xf32>
    %148 = arith.mulf %144, %144 : vector<8x128xf32>
    %149 = arith.addf %147, %148 : vector<8x128xf32>
    %150 = arith.subf %62, %60 : vector<8x128xf32>
    %151 = arith.subf %123, %121 : vector<8x128xf32>
    %152 = arith.subf %150, %151 : vector<8x128xf32>
    %153 = arith.addf %58, %64 : vector<8x128xf32>
    %154 = arith.addf %119, %125 : vector<8x128xf32>
    %155 = arith.subf %153, %154 : vector<8x128xf32>
    %156 = arith.addf %60, %62 : vector<8x128xf32>
    %157 = arith.addf %121, %123 : vector<8x128xf32>
    %158 = arith.subf %156, %157 : vector<8x128xf32>
    %159 = arith.subf %66, %56 : vector<8x128xf32>
    %160 = arith.subf %127, %117 : vector<8x128xf32>
    %161 = arith.subf %159, %160 : vector<8x128xf32>
    %162 = arith.subf %64, %58 : vector<8x128xf32>
    %163 = arith.subf %125, %119 : vector<8x128xf32>
    %164 = arith.subf %162, %163 : vector<8x128xf32>
    %165 = arith.addf %56, %66 : vector<8x128xf32>
    %166 = arith.addf %117, %127 : vector<8x128xf32>
    %167 = arith.subf %165, %166 : vector<8x128xf32>
    %168 = arith.mulf %152, %152 : vector<8x128xf32>
    %169 = arith.mulf %155, %155 : vector<8x128xf32>
    %170 = arith.addf %168, %169 : vector<8x128xf32>
    %171 = arith.mulf %158, %158 : vector<8x128xf32>
    %172 = arith.addf %170, %171 : vector<8x128xf32>
    %173 = arith.mulf %161, %161 : vector<8x128xf32>
    %174 = arith.addf %172, %173 : vector<8x128xf32>
    %175 = arith.mulf %164, %164 : vector<8x128xf32>
    %176 = arith.addf %174, %175 : vector<8x128xf32>
    %177 = arith.mulf %167, %167 : vector<8x128xf32>
    %178 = arith.addf %176, %177 : vector<8x128xf32>
    %179 = arith.addf %3, %149 : vector<8x128xf32>
    %180 = arith.addf %3, %178 : vector<8x128xf32>
    %c1_i32_33 = arith.constant 1 : i32
    %c0_34 = arith.constant 0 : index
    %c0_35 = arith.constant 0 : index
    %181 = vector.load %arg6[%c0_34, %c0_35] : memref<8x128xf32, #tpu.memory_space<vmem>>, vector<8x128xf32>
    %cst_36 = arith.constant 4.000000e+00 : f32
    %182 = vector.broadcast %cst_36 : f32 to vector<8x128xf32>
    %183 = arith.mulf %182, %180 : vector<8x128xf32>
    %184 = arith.addf %179, %183 : vector<8x128xf32>
    %185 = arith.addf %181, %184 : vector<8x128xf32>
    %c0_37 = arith.constant 0 : index
    %c0_38 = arith.constant 0 : index
    %186 = vector.load %arg6[%c0_37, %c0_38] : memref<8x128xf32, #tpu.memory_space<vmem>>, vector<8x128xf32>
    tpu.vector_store %arg6[%c0_37, %c0_38], %185 {strides = array<i32>} : memref<8x128xf32, #tpu.memory_space<vmem>>, vector<8x128xf32>,
    %c0_i32_39 = arith.constant 0 : i32
    %187 = arith.cmpi eq, %arg0, %c0_i32_39 : i32
    %188 = arith.extui %187 : i1 to i32
    %c0_i32_40 = arith.constant 0 : i32
    %189 = arith.cmpi ne, %188, %c0_i32_40 : i32
    scf.if %189 {
      %c0_41 = arith.constant 0 : index
      %c0_42 = arith.constant 0 : index
      %190 = vector.load %arg3[%c0_41, %c0_42] : memref<8x128xf32, #tpu.memory_space<vmem>>, vector<8x128xf32>
      %c0_43 = arith.constant 0 : index
      %c0_44 = arith.constant 0 : index
      %191 = vector.load %arg4[%c0_43, %c0_44] : memref<8x128xf32, #tpu.memory_space<vmem>>, vector<8x128xf32>
      %192 = arith.subf %190, %191 : vector<8x128xf32>
      %193 = arith.mulf %192, %192 : vector<8x128xf32>
      %194 = vector.shape_cast %193 : vector<8x128xf32> to vector<1x8x128xf32>
      %cst_45 = arith.constant dense<0.000000e+00> : vector<1xf32>
      %195 = vector.multi_reduction <add>, %194, %cst_45 [1, 2] : vector<1x8x128xf32> to vector<1xf32>
      %196 = vector.shape_cast %195 : vector<1xf32> to vector<1x1x1xf32>
      %197 = vector.extract %196[0, 0, 0] : f32 from vector<1x1x1xf32>
      %c0_46 = arith.constant 0 : index
      %c0_47 = arith.constant 0 : index
      %198 = vector.load %arg6[%c0_46, %c0_47] : memref<8x128xf32, #tpu.memory_space<vmem>>, vector<8x128xf32>
      %199 = vector.shape_cast %198 : vector<8x128xf32> to vector<1x8x128xf32>
      %cst_48 = arith.constant dense<0.000000e+00> : vector<1xf32>
      %200 = vector.multi_reduction <add>, %199, %cst_48 [1, 2] : vector<1x8x128xf32> to vector<1xf32>
      %201 = vector.shape_cast %200 : vector<1xf32> to vector<1x1x1xf32>
      %202 = vector.extract %201[0, 0, 0] : f32 from vector<1x1x1xf32>
      %cst_49 = arith.constant 0.00231481483 : f32
      %203 = arith.mulf %cst_49, %202 : f32
      %cst_50 = arith.constant 5.000000e-05 : f32
      %204 = arith.mulf %cst_50, %197 : f32
      %205 = arith.addf %203, %204 : f32
      %206 = vector.broadcast %205 : f32 to vector<1x1xf32>
      %c0_51 = arith.constant 0 : index
      %c0_52 = arith.constant 0 : index
      %207 = vector.load %arg5[%c0_51, %c0_52] : memref<1x1xf32, #tpu.memory_space<vmem>>, vector<1x1xf32>
      tpu.vector_store %arg5[%c0_51, %c0_52], %206 {strides = array<i32>} : memref<1x1xf32, #tpu.memory_space<vmem>>, vector<1x1xf32>,
    } else {
    }
    return
  }
  func.func @transform_0(%arg0: i32) -> (i32, i32, i32) {
    %c0_i32 = arith.constant 0 : i32
    %c0_i32_0 = arith.constant 0 : i32
    %c0_i32_1 = arith.constant 0 : i32
    return %c0_i32, %arg0, %c0_i32_0 : i32, i32, i32
  }
  func.func @transform_1(%arg0: i32) -> (i32, i32, i32) {
    %c0_i32 = arith.constant 0 : i32
    %c0_i32_0 = arith.constant 0 : i32
    %c0_i32_1 = arith.constant 0 : i32
    return %c0_i32, %arg0, %c0_i32_0 : i32, i32, i32
  }
  func.func @transform_2(%arg0: i32) -> (i32, i32) {
    %c0_i32 = arith.constant 0 : i32
    %c0_i32_0 = arith.constant 0 : i32
    %c0_i32_1 = arith.constant 0 : i32
    return %c0_i32, %c0_i32_0 : i32, i32
  }
  func.func @transform_3(%arg0: i32) -> (i32, i32) {
    %c0_i32 = arith.constant 0 : i32
    %c0_i32_0 = arith.constant 0 : i32
    %c0_i32_1 = arith.constant 0 : i32
    return %c0_i32, %c0_i32_0 : i32, i32
  }
  func.func @transform_4(%arg0: i32) -> (i32, i32) {
    %c0_i32 = arith.constant 0 : i32
    %c0_i32_0 = arith.constant 0 : i32
    %c0_i32_1 = arith.constant 0 : i32
    return %c0_i32, %c0_i32_0 : i32, i32
  }
}

</mosaic_0001>

<llo_original>
// kernel: vibe_loss.1
$region0: #{vibe_loss.1}
  #allocation0 [shape = 'u32[]', space=smem, size = 0x4, offset = 0x4, fixed_abs, tag = 'smem constant byte address 0x4 - core index']
  #allocation1 [shape = 'u32[144,128]{1,0:T(1,128)}', space=vmem, size = 0x12000, scoped, tag = 'internal scratch']
  #allocation2 [shape = 'f32[8,128]{1,0:T(8,128)}', space=vmem, size = 0x1000, scoped, tag = 'scratch operand']
  %s0 = inlined_call_operand.vmem [shape: f32[3,8,128], index: 0, kind: input, shape index: {}]
  %s1 = inlined_call_operand.vmem [shape: f32[3,8,128], index: 1, kind: input, shape index: {}]
  %s2 = inlined_call_operand.vmem [shape: f32[8,128], index: 2, kind: input, shape index: {}]
  %s3 = inlined_call_operand.vmem [shape: f32[8,128], index: 3, kind: input, shape index: {}]
  %s4 = inlined_call_operand.hbm [shape: f32[1,1], index: 4, kind: output, shape index: {}]
  %s5 = sld [smem:[#allocation0]]
  $region34: #{vibe_loss.1} parent=0
    _
  %s7 = ssub.s32 1, %s5
  %s8 = scalar_select 0, %s7, %s5
  $region1: #{vibe_loss.1} parent=0
    #allocation3 [shape = 'u8[512]{0}', space=vmem, size = 0x400, scoped, tag = 'output window, operand 0, single buffered']
    #allocation4 [shape = 's32[1]{0}', space=sflag, size = 0x4, scoped, tag = 'scoped memory for vibe_loss.1']
    %9 = vsyncpa [#allocation4], 0
    // Predicated region
    $region2: #{vibe_loss.1} parent=1 // pred_check
      _
    $region3: #{vibe_loss.1} parent=1 // pred_check_branch
      %11 = sbr.rel (0) target = $region5
    $region4: #{vibe_loss.1} parent=1 // pred_region
      _
    $region5: #{vibe_loss.1} parent=1 // pred_fallthru
      _
    // Predicated region
    $region6: #{vibe_loss.1} parent=1 // pred_check
      _
    $region7: #{vibe_loss.1} parent=1 // pred_check_branch
      %13 = sbr.rel (0) target = $region9
    $region8: #{vibe_loss.1} parent=1 // pred_region
      _
    $region9: #{vibe_loss.1} parent=1 // pred_fallthru
      _
    // Predicated region
    $region10: #{vibe_loss.1} parent=1 // pred_check
      _
    $region11: #{vibe_loss.1} parent=1 // pred_check_branch
      %15 = sbr.rel (0) target = $region13
    $region12: #{vibe_loss.1} parent=1 // pred_region
      _
    $region13: #{vibe_loss.1} parent=1 // pred_fallthru
      _
    // Predicated region
    $region14: #{vibe_loss.1} parent=1 // pred_check
      _
    $region15: #{vibe_loss.1} parent=1 // pred_check_branch
      %17 = sbr.rel (0) target = $region17
    $region16: #{vibe_loss.1} parent=1 // pred_region
      _
    $region17: #{vibe_loss.1} parent=1 // pred_fallthru
      _
    %p18 = scmp.eq.s32.totalorder 0, 0
    // Predicated region
    $region18: #{vibe_loss.1} parent=1 // pred_check
      %p19 = pneg %p18
    $region19: #{vibe_loss.1} parent=1 // pred_check_branch
      %21 = sbr.rel (%p19) target = $region21
    $region20: #{vibe_loss.1} parent=1 // pred_region
      %22 = vst [vmem:[#allocation2] sm:$0xff] 0.0
    $region21: #{vibe_loss.1} parent=1 // pred_fallthru
      _
    %v23 = vld [vmem:[%s0] sm:$0xff]
    %s24 = scalar_lea.vmem %s0, 8
    %v25 = vld [vmem:[%s24] sm:$0xff]
    %s26 = scalar_lea.vmem %s0, 16
    %v27 = vld [vmem:[%s26] sm:$0xff]
    %v28 = vadd.f32 %v23, 1e-08
    %v29 = vadd.f32 %v25, 1e-08
    %v30 = vadd.f32 %v27, 1e-08
    %v31 = vmul.f32 %v28, %v28
    %v32 = vmul.f32 %v29, %v29
    %v33 = vadd.f32 %v31, %v32
    %v34 = vmul.f32 %v30, %v30
    %v35 = vadd.f32 %v33, %v34
    %v36 = vrsqrt.pop %v35
    %v37 = vmul.f32 %v35, %v36
    %v38 = vmul.f32 %v37, 0.5
    %v39 = vand.u32 2147483647, %v38
    %vm40 = vcmp.le.f32.partialorder %v39, 0.7853982
    %vm41 = vcmp.lt.s32.totalorder %v38, 0
    %v42 = vand.u32 %v38, 2139095040
    %v43 = vshrl.u32 %v42, 23
    %v44 = vsub.s32 %v43, 127
    %v45 = vand.u32 2147483647, %v38
    %v46 = vand.u32 %v45, 8388607
    %v47 = vor.u32 %v46, 8388608
    %v48 = vsub.s32 0, %v47
    %v49 = vadd.s32 %v44, 1
    %vm50 = vcmp.gt.s32.totalorder %v49, 0
    %v51 = vsel %vm50, %v49, 0
    %v52 = vshrl.u32 %v51, 5
    %v53 = vand.u32 %v51, 31
    %v54 = vsub.s32 32, %v53
    %v55 = vshrl.u32 683565275, %v54
    %v56 = vshll.u32 683565275, %v53
    %v57 = vshrl.u32 2475754826, %v54
    %v58 = vor.u32 %v56, %v57
    %v59 = vshll.u32 2475754826, %v53
    %v60 = vshrl.u32 2131351028, %v54
    %v61 = vor.u32 %v59, %v60
    %v62 = vshll.u32 2131351028, %v53
    %v63 = vshrl.u32 2102212464, %v54
    %v64 = vor.u32 %v62, %v63
    %v65 = vshll.u32 2102212464, %v53
    %v66 = vshrl.u32 920167782, %v54
    %v67 = vor.u32 %v65, %v66
    %v68 = vshll.u32 920167782, %v53
    %v69 = vshrl.u32 1326507024, %v54
    %v70 = vor.u32 %v68, %v69
    %vm71 = vcmp.lt.s32.totalorder %v52, 1
    %vm72 = vcmp.lt.s32.totalorder %v52, 2
    %vm73 = vcmp.lt.s32.totalorder %v52, 3
    %vm74 = vcmp.lt.s32.totalorder %v52, 4
    %v75 = vsel %vm71, %v55, %v58
    %v76 = vsel %vm74, %v64, 2102212464
    %v77 = vsel %vm73, %v61, %v76
    %v78 = vsel %vm72, %v75, %v77
    %v79 = vsel %vm71, %v58, %v61
    %v80 = vsel %vm74, %v67, 920167782
    %v81 = vsel %vm73, %v64, %v80
    %v82 = vsel %vm72, %v79, %v81
    %v83 = vsel %vm71, %v61, %v64
    %v84 = vsel %vm74, %v70, 1326507024
    %v85 = vsel %vm73, %v67, %v84
    %v86 = vsel %vm72, %v83, %v85
    %v87 = vshll.u32 %v47, 8
    %v88 = vmul.u32.u64.compose %v87, %v86
    %v89 = vextract.low.u32 %v88
    %v90 = vextract.high.u32 %v88
    %v91 = vmul.u32.u64.compose %v87, %v82
    %v92 = vextract.low.u32 %v91
    %v93 = vextract.high.u32 %v91
    %v94 = vmul.u32 %v87, %v78
    %v95 = vadd.s32 %v90, %v92
    %vm96 = vc.u32 %v90, %v92
    %v97 = vadd.s32 %v93, 1
    %v98 = vsel %vm96, %v97, %v93
    %v99 = vadd.s32 %v94, %v98
    %v100 = vadd.s32 %v99, 536870912
    %v101 = vshrl.u32 %v100, 30
    %v102 = vshll.u32 %v101, 30
    %v103 = vsub.s32 %v99, %v102
    %vm104 = vcmp.lt.s32.totalorder %v103, 0
    %v105 = vsub.s32 0, %v103
    %v106 = vsel %vm104, %v105, %v103
    %v107 = vclz %v106
    %v108 = vsub.s32 %v107, 2
    %vm109 = vcmp.gt.s32.totalorder 0, %v108
    %v110 = vsel %vm109, 0, %v108
    %v111 = vsub.s32 32, %v110
    %v112 = vshll.u32 %v103, %v110
    %v113 = vshrl.u32 %v95, %v111
    %v114 = vor.u32 %v112, %v113
    %v115 = vsub.s32 4294967266, %v110
    %v116 = vadd.s32 %v115, 127
    %v117 = vshll.u32 %v116, 23
    %v118 = vor.u32 4788187, %v117
    %v119 = vand.u32 2147483647, %v118
    %v121 = vcvt.s32.f32 %v114
    %v122 = vmul.f32 %v121, %v119
    %v123 = vxor.u32 %v122, 2147483648
    %v124 = vsel %vm41, %v123, %v122
    %v125 = vsub.s32 4, %v101
    %v126 = vsel %vm41, %v125, %v101
    %v127 = vsel %vm40, %v38, %v124
    %v128 = vsel %vm40, 0, %v126
    %v129 = vcosq.f32.pop %v127
    %v130 = vsinq.f32.pop %v127
    %vm131 = vweird.f32 %v38
    %v132 = vand.u32 %v128, 3
    %vm133 = vcmp.lt.s32.totalorder %v132, 2
    %vm134 = vcmp.eq.s32.totalorder %v132, 0
    %v135 = vxor.u32 %v130, 2147483648
    %v136 = vsel %vm134, %v129, %v135
    %vm137 = vcmp.eq.s32.totalorder %v132, 2
    %v138 = vxor.u32 %v129, 2147483648
    %v139 = vsel %vm137, %v138, %v130
    %v140 = vsel %vm133, %v136, %v139
    %v141 = vsel %vm131, nan, %v140
    %v142 = vand.u32 2147483647, %v38
    %vm143 = vcmp.le.f32.partialorder %v142, 0.7853982
    %vm144 = vcmp.lt.s32.totalorder %v38, 0
    %v145 = vand.u32 %v38, 2139095040
    %v146 = vshrl.u32 %v145, 23
    %v147 = vsub.s32 %v146, 127
    %v148 = vand.u32 2147483647, %v38
    %v149 = vand.u32 %v148, 8388607
    %v150 = vor.u32 %v149, 8388608
    %v151 = vsub.s32 0, %v150
    %v152 = vadd.s32 %v147, 1
    %vm153 = vcmp.gt.s32.totalorder %v152, 0
    %v154 = vsel %vm153, %v152, 0
    %v155 = vshrl.u32 %v154, 5
    %v156 = vand.u32 %v154, 31
    %v157 = vsub.s32 32, %v156
    %v158 = vshrl.u32 683565275, %v157
    %v159 = vshll.u32 683565275, %v156
    %v160 = vshrl.u32 2475754826, %v157
    %v161 = vor.u32 %v159, %v160
    %v162 = vshll.u32 2475754826, %v156
    %v163 = vshrl.u32 2131351028, %v157
    %v164 = vor.u32 %v162, %v163
    %v165 = vshll.u32 2131351028, %v156
    %v166 = vshrl.u32 2102212464, %v157
    %v167 = vor.u32 %v165, %v166
    %v168 = vshll.u32 2102212464, %v156
    %v169 = vshrl.u32 920167782, %v157
    %v170 = vor.u32 %v168, %v169
    %v171 = vshll.u32 920167782, %v156
    %v172 = vshrl.u32 1326507024, %v157
    %v173 = vor.u32 %v171, %v172
    %vm174 = vcmp.lt.s32.totalorder %v155, 1
    %vm175 = vcmp.lt.s32.totalorder %v155, 2
    %vm176 = vcmp.lt.s32.totalorder %v155, 3
    %vm177 = vcmp.lt.s32.totalorder %v155, 4
    %v178 = vsel %vm174, %v158, %v161
    %v179 = vsel %vm177, %v167, 2102212464
    %v180 = vsel %vm176, %v164, %v179
    %v181 = vsel %vm175, %v178, %v180
    %v182 = vsel %vm174, %v161, %v164
    %v183 = vsel %vm177, %v170, 920167782
    %v184 = vsel %vm176, %v167, %v183
    %v185 = vsel %vm175, %v182, %v184
    %v186 = vsel %vm174, %v164, %v167
    %v187 = vsel %vm177, %v173, 1326507024
    %v188 = vsel %vm176, %v170, %v187
    %v189 = vsel %vm175, %v186, %v188
    %v190 = vshll.u32 %v150, 8
    %v191 = vmul.u32.u64.compose %v190, %v189
    %v192 = vextract.low.u32 %v191
    %v193 = vextract.high.u32 %v191
    %v194 = vmul.u32.u64.compose %v190, %v185
    %v195 = vextract.low.u32 %v194
    %v196 = vextract.high.u32 %v194
    %v197 = vmul.u32 %v190, %v181
    %v198 = vadd.s32 %v193, %v195
    %vm199 = vc.u32 %v193, %v195
    %v200 = vadd.s32 %v196, 1
    %v201 = vsel %vm199, %v200, %v196
    %v202 = vadd.s32 %v197, %v201
    %v203 = vadd.s32 %v202, 536870912
    %v204 = vshrl.u32 %v203, 30
    %v205 = vshll.u32 %v204, 30
    %v206 = vsub.s32 %v202, %v205
    %vm207 = vcmp.lt.s32.totalorder %v206, 0
    %v208 = vsub.s32 0, %v206
    %v209 = vsel %vm207, %v208, %v206
    %v210 = vclz %v209
    %v211 = vsub.s32 %v210, 2
    %vm212 = vcmp.gt.s32.totalorder 0, %v211
    %v213 = vsel %vm212, 0, %v211
    %v214 = vsub.s32 32, %v213
    %v215 = vshll.u32 %v206, %v213
    %v216 = vshrl.u32 %v198, %v214
    %v217 = vor.u32 %v215, %v216
    %v218 = vsub.s32 4294967266, %v213
    %v219 = vadd.s32 %v218, 127
    %v220 = vshll.u32 %v219, 23
    %v221 = vor.u32 4788187, %v220
    %v222 = vand.u32 2147483647, %v221
    %v224 = vcvt.s32.f32 %v217
    %v225 = vmul.f32 %v224, %v222
    %v226 = vxor.u32 %v225, 2147483648
    %v227 = vsel %vm144, %v226, %v225
    %v228 = vsub.s32 4, %v204
    %v229 = vsel %vm144, %v228, %v204
    %v230 = vsel %vm143, %v38, %v227
    %v231 = vsel %vm143, 0, %v229
    %v232 = vcosq.f32.pop %v230
    %v233 = vsinq.f32.pop %v230
    %vm234 = vweird.f32 %v38
    %v235 = vadd.s32 %v231, 3
    %v236 = vand.u32 %v235, 3
    %vm237 = vcmp.lt.s32.totalorder %v236, 2
    %vm238 = vcmp.eq.s32.totalorder %v236, 0
    %v239 = vxor.u32 %v233, 2147483648
    %v240 = vsel %vm238, %v232, %v239
    %vm241 = vcmp.eq.s32.totalorder %v236, 2
    %v242 = vxor.u32 %v232, 2147483648
    %v243 = vsel %vm241, %v242, %v233
    %v244 = vsel %vm237, %v240, %v243
    %v245 = vsel %vm234, nan, %v244
    %v246 = vmul.f32 %v245, %v36
    %v247 = vmul.f32 %v23, %v246
    %v248 = vmul.f32 %v25, %v246
    %v249 = vmul.f32 %v27, %v246
    %v250 = vmul.f32 %v141, %v141
    %v251 = vmul.f32 %v247, %v247
    %v252 = vmul.f32 %v248, %v248
    %v253 = vmul.f32 %v249, %v249
    %v254 = vadd.f32 %v250, %v251
    %v255 = vadd.f32 %v254, %v252
    %v256 = vadd.f32 %v255, %v253
    %v257 = vrcp.pop %v256
    %v258 = vmul.f32 %v256, %v257
    %v259 = vsub.f32 2.0, %v258
    %v260 = vmul.f32 %v257, %v259
    %v261 = vmul.f32 %v250, %v260
    %v262 = vmul.f32 %v251, %v260
    %v263 = vmul.f32 %v252, %v260
    %v264 = vmul.f32 %v253, %v260
    %v265 = vmul.f32 %v141, %v247
    %v266 = vmul.f32 %v265, %v260
    %v267 = vmul.f32 %v141, %v248
    %v268 = vmul.f32 %v267, %v260
    %v269 = vmul.f32 %v141, %v249
    %v270 = vmul.f32 %v269, %v260
    %v271 = vmul.f32 %v247, %v248
    %v272 = vmul.f32 %v271, %v260
    %v273 = vmul.f32 %v247, %v249
    %v274 = vmul.f32 %v273, %v260
    %v275 = vmul.f32 %v248, %v249
    %v276 = vmul.f32 %v275, %v260
    %v277 = vld [vmem:[%s1] sm:$0xff]
    %s278 = scalar_lea.vmem %s1, 8
    %v279 = vld [vmem:[%s278] sm:$0xff]
    %s280 = scalar_lea.vmem %s1, 16
    %v281 = vld [vmem:[%s280] sm:$0xff]
    %v282 = vadd.f32 %v277, 1e-08
    %v283 = vadd.f32 %v279, 1e-08
    %v284 = vadd.f32 %v281, 1e-08
    %v285 = vmul.f32 %v282, %v282
    %v286 = vmul.f32 %v283, %v283
    %v287 = vadd.f32 %v285, %v286
    %v288 = vmul.f32 %v284, %v284
    %v289 = vadd.f32 %v287, %v288
    %v290 = vrsqrt.pop %v289
    %v291 = vmul.f32 %v289, %v290
    %v292 = vmul.f32 %v291, 0.5
    %v293 = vand.u32 2147483647, %v292
    %vm294 = vcmp.le.f32.partialorder %v293, 0.7853982
    %vm295 = vcmp.lt.s32.totalorder %v292, 0
    %v296 = vand.u32 %v292, 2139095040
    %v297 = vshrl.u32 %v296, 23
    %v298 = vsub.s32 %v297, 127
    %v299 = vand.u32 2147483647, %v292
    %v300 = vand.u32 %v299, 8388607
    %v301 = vor.u32 %v300, 8388608
    %v302 = vsub.s32 0, %v301
    %v303 = vadd.s32 %v298, 1
    %vm304 = vcmp.gt.s32.totalorder %v303, 0
    %v305 = vsel %vm304, %v303, 0
    %v306 = vshrl.u32 %v305, 5
    %v307 = vand.u32 %v305, 31
    %v308 = vsub.s32 32, %v307
    %v309 = vshrl.u32 683565275, %v308
    %v310 = vshll.u32 683565275, %v307
    %v311 = vshrl.u32 2475754826, %v308
    %v312 = vor.u32 %v310, %v311
    %v313 = vshll.u32 2475754826, %v307
    %v314 = vshrl.u32 2131351028, %v308
    %v315 = vor.u32 %v313, %v314
    %v316 = vshll.u32 2131351028, %v307
    %v317 = vshrl.u32 2102212464, %v308
    %v318 = vor.u32 %v316, %v317
    %v319 = vshll.u32 2102212464, %v307
    %v320 = vshrl.u32 920167782, %v308
    %v321 = vor.u32 %v319, %v320
    %v322 = vshll.u32 920167782, %v307
    %v323 = vshrl.u32 1326507024, %v308
    %v324 = vor.u32 %v322, %v323
    %vm325 = vcmp.lt.s32.totalorder %v306, 1
    %vm326 = vcmp.lt.s32.totalorder %v306, 2
    %vm327 = vcmp.lt.s32.totalorder %v306, 3
    %vm328 = vcmp.lt.s32.totalorder %v306, 4
    %v329 = vsel %vm325, %v309, %v312
    %v330 = vsel %vm328, %v318, 2102212464
    %v331 = vsel %vm327, %v315, %v330
    %v332 = vsel %vm326, %v329, %v331
    %v333 = vsel %vm325, %v312, %v315
    %v334 = vsel %vm328, %v321, 920167782
    %v335 = vsel %vm327, %v318, %v334
    %v336 = vsel %vm326, %v333, %v335
    %v337 = vsel %vm325, %v315, %v318
    %v338 = vsel %vm328, %v324, 1326507024
    %v339 = vsel %vm327, %v321, %v338
    %v340 = vsel %vm326, %v337, %v339
    %v341 = vshll.u32 %v301, 8
    %v342 = vmul.u32.u64.compose %v341, %v340
    %v343 = vextract.low.u32 %v342
    %v344 = vextract.high.u32 %v342
    %v345 = vmul.u32.u64.compose %v341, %v336
    %v346 = vextract.low.u32 %v345
    %v347 = vextract.high.u32 %v345
    %v348 = vmul.u32 %v341, %v332
    %v349 = vadd.s32 %v344, %v346
    %vm350 = vc.u32 %v344, %v346
    %v351 = vadd.s32 %v347, 1
    %v352 = vsel %vm350, %v351, %v347
    %v353 = vadd.s32 %v348, %v352
    %v354 = vadd.s32 %v353, 536870912
    %v355 = vshrl.u32 %v354, 30
    %v356 = vshll.u32 %v355, 30
    %v357 = vsub.s32 %v353, %v356
    %vm358 = vcmp.lt.s32.totalorder %v357, 0
    %v359 = vsub.s32 0, %v357
    %v360 = vsel %vm358, %v359, %v357
    %v361 = vclz %v360
    %v362 = vsub.s32 %v361, 2
    %vm363 = vcmp.gt.s32.totalorder 0, %v362
    %v364 = vsel %vm363, 0, %v362
    %v365 = vsub.s32 32, %v364
    %v366 = vshll.u32 %v357, %v364
    %v367 = vshrl.u32 %v349, %v365
    %v368 = vor.u32 %v366, %v367
    %v369 = vsub.s32 4294967266, %v364
    %v370 = vadd.s32 %v369, 127
    %v371 = vshll.u32 %v370, 23
    %v372 = vor.u32 4788187, %v371
    %v373 = vand.u32 2147483647, %v372
    %v375 = vcvt.s32.f32 %v368
    %v376 = vmul.f32 %v375, %v373
    %v377 = vxor.u32 %v376, 2147483648
    %v378 = vsel %vm295, %v377, %v376
    %v379 = vsub.s32 4, %v355
    %v380 = vsel %vm295, %v379, %v355
    %v381 = vsel %vm294, %v292, %v378
    %v382 = vsel %vm294, 0, %v380
    %v383 = vcosq.f32.pop %v381
    %v384 = vsinq.f32.pop %v381
    %vm385 = vweird.f32 %v292
    %v386 = vand.u32 %v382, 3
    %vm387 = vcmp.lt.s32.totalorder %v386, 2
    %vm388 = vcmp.eq.s32.totalorder %v386, 0
    %v389 = vxor.u32 %v384, 2147483648
    %v390 = vsel %vm388, %v383, %v389
    %vm391 = vcmp.eq.s32.totalorder %v386, 2
    %v392 = vxor.u32 %v383, 2147483648
    %v393 = vsel %vm391, %v392, %v384
    %v394 = vsel %vm387, %v390, %v393
    %v395 = vsel %vm385, nan, %v394
    %v396 = vand.u32 2147483647, %v292
    %vm397 = vcmp.le.f32.partialorder %v396, 0.7853982
    %vm398 = vcmp.lt.s32.totalorder %v292, 0
    %v399 = vand.u32 %v292, 2139095040
    %v400 = vshrl.u32 %v399, 23
    %v401 = vsub.s32 %v400, 127
    %v402 = vand.u32 2147483647, %v292
    %v403 = vand.u32 %v402, 8388607
    %v404 = vor.u32 %v403, 8388608
    %v405 = vsub.s32 0, %v404
    %v406 = vadd.s32 %v401, 1
    %vm407 = vcmp.gt.s32.totalorder %v406, 0
    %v408 = vsel %vm407, %v406, 0
    %v409 = vshrl.u32 %v408, 5
    %v410 = vand.u32 %v408, 31
    %v411 = vsub.s32 32, %v410
    %v412 = vshrl.u32 683565275, %v411
    %v413 = vshll.u32 683565275, %v410
    %v414 = vshrl.u32 2475754826, %v411
    %v415 = vor.u32 %v413, %v414
    %v416 = vshll.u32 2475754826, %v410
    %v417 = vshrl.u32 2131351028, %v411
    %v418 = vor.u32 %v416, %v417
    %v419 = vshll.u32 2131351028, %v410
    %v420 = vshrl.u32 2102212464, %v411
    %v421 = vor.u32 %v419, %v420
    %v422 = vshll.u32 2102212464, %v410
    %v423 = vshrl.u32 920167782, %v411
    %v424 = vor.u32 %v422, %v423
    %v425 = vshll.u32 920167782, %v410
    %v426 = vshrl.u32 1326507024, %v411
    %v427 = vor.u32 %v425, %v426
    %vm428 = vcmp.lt.s32.totalorder %v409, 1
    %vm429 = vcmp.lt.s32.totalorder %v409, 2
    %vm430 = vcmp.lt.s32.totalorder %v409, 3
    %vm431 = vcmp.lt.s32.totalorder %v409, 4
    %v432 = vsel %vm428, %v412, %v415
    %v433 = vsel %vm431, %v421, 2102212464
    %v434 = vsel %vm430, %v418, %v433
    %v435 = vsel %vm429, %v432, %v434
    %v436 = vsel %vm428, %v415, %v418
    %v437 = vsel %vm431, %v424, 920167782
    %v438 = vsel %vm430, %v421, %v437
    %v439 = vsel %vm429, %v436, %v438
    %v440 = vsel %vm428, %v418, %v421
    %v441 = vsel %vm431, %v427, 1326507024
    %v442 = vsel %vm430, %v424, %v441
    %v443 = vsel %vm429, %v440, %v442
    %v444 = vshll.u32 %v404, 8
    %v445 = vmul.u32.u64.compose %v444, %v443
    %v446 = vextract.low.u32 %v445
    %v447 = vextract.high.u32 %v445
    %v448 = vmul.u32.u64.compose %v444, %v439
    %v449 = vextract.low.u32 %v448
    %v450 = vextract.high.u32 %v448
    %v451 = vmul.u32 %v444, %v435
    %v452 = vadd.s32 %v447, %v449
    %vm453 = vc.u32 %v447, %v449
    %v454 = vadd.s32 %v450, 1
    %v455 = vsel %vm453, %v454, %v450
    %v456 = vadd.s32 %v451, %v455
    %v457 = vadd.s32 %v456, 536870912
    %v458 = vshrl.u32 %v457, 30
    %v459 = vshll.u32 %v458, 30
    %v460 = vsub.s32 %v456, %v459
    %vm461 = vcmp.lt.s32.totalorder %v460, 0
    %v462 = vsub.s32 0, %v460
    %v463 = vsel %vm461, %v462, %v460
    %v464 = vclz %v463
    %v465 = vsub.s32 %v464, 2
    %vm466 = vcmp.gt.s32.totalorder 0, %v465
    %v467 = vsel %vm466, 0, %v465
    %v468 = vsub.s32 32, %v467
    %v469 = vshll.u32 %v460, %v467
    %v470 = vshrl.u32 %v452, %v468
    %v471 = vor.u32 %v469, %v470
    %v472 = vsub.s32 4294967266, %v467
    %v473 = vadd.s32 %v472, 127
    %v474 = vshll.u32 %v473, 23
    %v475 = vor.u32 4788187, %v474
    %v476 = vand.u32 2147483647, %v475
    %v478 = vcvt.s32.f32 %v471
    %v479 = vmul.f32 %v478, %v476
    %v480 = vxor.u32 %v479, 2147483648
    %v481 = vsel %vm398, %v480, %v479
    %v482 = vsub.s32 4, %v458
    %v483 = vsel %vm398, %v482, %v458
    %v484 = vsel %vm397, %v292, %v481
    %v485 = vsel %vm397, 0, %v483
    %v486 = vcosq.f32.pop %v484
    %v487 = vsinq.f32.pop %v484
    %vm488 = vweird.f32 %v292
    %v489 = vadd.s32 %v485, 3
    %v490 = vand.u32 %v489, 3
    %vm491 = vcmp.lt.s32.totalorder %v490, 2
    %vm492 = vcmp.eq.s32.totalorder %v490, 0
    %v493 = vxor.u32 %v487, 2147483648
    %v494 = vsel %vm492, %v486, %v493
    %vm495 = vcmp.eq.s32.totalorder %v490, 2
    %v496 = vxor.u32 %v486, 2147483648
    %v497 = vsel %vm495, %v496, %v487
    %v498 = vsel %vm491, %v494, %v497
    %v499 = vsel %vm488, nan, %v498
    %v500 = vmul.f32 %v499, %v290
    %v501 = vmul.f32 %v277, %v500
    %v502 = vmul.f32 %v279, %v500
    %v503 = vmul.f32 %v281, %v500
    %v504 = vmul.f32 %v395, %v395
    %v505 = vmul.f32 %v501, %v501
    %v506 = vmul.f32 %v502, %v502
    %v507 = vmul.f32 %v503, %v503
    %v508 = vadd.f32 %v504, %v505
    %v509 = vadd.f32 %v508, %v506
    %v510 = vadd.f32 %v509, %v507
    %v511 = vrcp.pop %v510
    %v512 = vmul.f32 %v510, %v511
    %v513 = vsub.f32 2.0, %v512
    %v514 = vmul.f32 %v511, %v513
    %v515 = vmul.f32 %v504, %v514
    %v516 = vmul.f32 %v505, %v514
    %v517 = vmul.f32 %v506, %v514
    %v518 = vmul.f32 %v507, %v514
    %v519 = vmul.f32 %v395, %v501
    %v520 = vmul.f32 %v519, %v514
    %v521 = vmul.f32 %v395, %v502
    %v522 = vmul.f32 %v521, %v514
    %v523 = vmul.f32 %v395, %v503
    %v524 = vmul.f32 %v523, %v514
    %v525 = vmul.f32 %v501, %v502
    %v526 = vmul.f32 %v525, %v514
    %v527 = vmul.f32 %v501, %v503
    %v528 = vmul.f32 %v527, %v514
    %v529 = vmul.f32 %v502, %v503
    %v530 = vmul.f32 %v529, %v514
    %v531 = vadd.f32 %v261, %v262
    %v532 = vadd.f32 %v263, %v264
    %v533 = vsub.f32 %v261, %v262
    %v534 = vsub.f32 %v263, %v264
    %v535 = vadd.f32 %v515, %v516
    %v536 = vadd.f32 %v517, %v518
    %v537 = vsub.f32 %v515, %v516
    %v538 = vsub.f32 %v517, %v518
    %v539 = vsub.f32 %v531, %v532
    %v540 = vsub.f32 %v535, %v536
    %v541 = vsub.f32 %v539, %v540
    %v542 = vadd.f32 %v533, %v534
    %v543 = vadd.f32 %v537, %v538
    %v544 = vsub.f32 %v542, %v543
    %v545 = vsub.f32 %v533, %v534
    %v546 = vsub.f32 %v537, %v538
    %v547 = vsub.f32 %v545, %v546
    %v548 = vmul.f32 %v541, %v541
    %v549 = vmul.f32 %v544, %v544
    %v550 = vadd.f32 %v548, %v549
    %v551 = vmul.f32 %v547, %v547
    %v552 = vadd.f32 %v550, %v551
    %v553 = vsub.f32 %v272, %v270
    %v554 = vsub.f32 %v526, %v524
    %v555 = vsub.f32 %v553, %v554
    %v556 = vadd.f32 %v268, %v274
    %v557 = vadd.f32 %v522, %v528
    %v558 = vsub.f32 %v556, %v557
    %v559 = vadd.f32 %v270, %v272
    %v560 = vadd.f32 %v524, %v526
    %v561 = vsub.f32 %v559, %v560
    %v562 = vsub.f32 %v276, %v266
    %v563 = vsub.f32 %v530, %v520
    %v564 = vsub.f32 %v562, %v563
    %v565 = vsub.f32 %v274, %v268
    %v566 = vsub.f32 %v528, %v522
    %v567 = vsub.f32 %v565, %v566
    %v568 = vadd.f32 %v266, %v276
    %v569 = vadd.f32 %v520, %v530
    %v570 = vsub.f32 %v568, %v569
    %v571 = vmul.f32 %v555, %v555
    %v572 = vmul.f32 %v558, %v558
    %v573 = vadd.f32 %v571, %v572
    %v574 = vmul.f32 %v561, %v561
    %v575 = vadd.f32 %v573, %v574
    %v576 = vmul.f32 %v564, %v564
    %v577 = vadd.f32 %v575, %v576
    %v578 = vmul.f32 %v567, %v567
    %v579 = vadd.f32 %v577, %v578
    %v580 = vmul.f32 %v570, %v570
    %v581 = vadd.f32 %v579, %v580
    %v582 = vadd.f32 %v552, 0.0
    %v583 = vadd.f32 %v581, 0.0
    %v584 = vld [vmem:[#allocation2] sm:$0xff]
    %v585 = vmul.f32 %v583, 4.0
    %v586 = vadd.f32 %v582, %v585
    %v587 = vadd.f32 %v584, %v586
    %588 = vst [vmem:[#allocation2] sm:$0xff] %v587
    // Predicated region
    $region22: #{vibe_loss.1} parent=1 // pred_check
      %p589 = pneg %p18
    $region23: #{vibe_loss.1} parent=1 // pred_check_branch
      %591 = sbr.rel (%p589) target = $region25
    $region24: #{vibe_loss.1} parent=1 // pred_region
      %v592 = vld [vmem:[%s2] sm:$0xff]
      %v593 = vld [vmem:[%s3] sm:$0xff]
      %v594 = vsub.f32 %v592, %v593
      %v595 = vmul.f32 %v594, %v594
      %596 = vadd.xlane.f32.xlu0 %v595
      %v597 = vpop.xlane.xlu0 %596
      %v598 = vrot.slane %v597, 4
      %v599 = vadd.f32 %v597, %v598
      %v600 = vrot.slane %v599, 2
      %v601 = vadd.f32 %v599, %v600
      %v602 = vrot.slane %v601, 1
      %v603 = vadd.f32 %v601, %v602
      %s604 = vtos %v603
      %v605 = vld [vmem:[#allocation2] sm:$0xff]
      %606 = vadd.xlane.f32.xlu0 %v605
      %v607 = vpop.xlane.xlu0 %606
      %v608 = vrot.slane %v607, 4
      %v609 = vadd.f32 %v607, %v608
      %v610 = vrot.slane %v609, 2
      %v611 = vadd.f32 %v609, %v610
      %v612 = vrot.slane %v611, 1
      %v613 = vadd.f32 %v611, %v612
      %s614 = vtos %v613
      %s615 = smul.f32 %s614, 0.0023148148
      %s616 = smul.f32 %s604, 5e-05
      %s617 = sadd.f32 %s615, %s616
      %v618 = vstv %s617
      %vm619 = vcmask 0
      %620 = vst.msk [vmem:[#allocation3] sm:$0x1] %vm619, %v618
    $region25: #{vibe_loss.1} parent=1 // pred_fallthru
      _
    // Predicated region
    $region26: #{vibe_loss.1} parent=1 // pred_check
      _
    $region27: #{vibe_loss.1} parent=1 // pred_check_branch
      %622 = sbr.rel (0) target = $region29
    $region28: #{vibe_loss.1} parent=1 // pred_region
      %s624 = ssub.s32 16, 16
      %625 = vsyncadd [#allocation4], %s624
      %s627 = sshll.u32 [#allocation3], 4
      %s628 = int_to_ptr.vmem [resolvable:$true] %s627
      %630 = dma.vmem_to_hbm [thread:$0]  %s628, 16, %s4, [#allocation4]
    $region29: #{vibe_loss.1} parent=1 // pred_fallthru
      _
    // Predicated region
    $region30: #{vibe_loss.1} parent=1 // pred_check
      _
    $region31: #{vibe_loss.1} parent=1 // pred_check_branch
      %632 = sbr.rel (0) target = $region33
    $region32: #{vibe_loss.1} parent=1 // pred_region
      %633 = dma.done [#allocation4], 16
    $region33: #{vibe_loss.1} parent=1 // pred_fallthru
      _
    %634 = vsyncpa [#allocation4], 1

</llo_original>
